<compile_context>
chip_gen: v6e
topology: v6e:2x2x1
jax: 0.10.0
libtpu: 0.0.40
codegen_flags: <defaults>
</compile_context>

<pallas_src>
import jax
import jax.numpy as jnp
from jax.experimental import pallas as pl
from jax.experimental.pallas import tpu as pltpu


def _mlp3(x_ref, w1_ref, b1_ref, w2_ref, b2_ref, w3_ref, b3_ref):
    # x_ref: (TM, P+1).  w1 has a zero first row, so channel 0 contributes
    # nothing -> numerically identical to the reference's x[:, :, 1:] slice
    # (assuming finite inputs), with zero relayout cost.
    h = jnp.dot(x_ref[...], w1_ref[...],
                preferred_element_type=jnp.float32) + b1_ref[...]
    h = jnp.maximum(h, 0.01 * h)                          # LeakyReLU(0.01)
    h = jnp.dot(h, w2_ref[...],
                preferred_element_type=jnp.float32) + b2_ref[...]
    h = jnp.maximum(h, 0.01 * h)                          # LeakyReLU(0.01)
    return jnp.dot(h, w3_ref[...],
                   preferred_element_type=jnp.float32) + b3_ref[...]


def _decoder_kernel_masked(x_ref, w1_ref, b1_ref, w2_ref, b2_ref, w3_ref,
                           b3_ref, m_ref, o_ref):
    y = _mlp3(x_ref, w1_ref, b1_ref, w2_ref, b2_ref, w3_ref, b3_ref)
    y = y * m_ref[...]                                    # (TM,1) broadcast
    # Fold (TM, M) -> o_ref.shape (e.g. (TM/8, 128)) so the store is lane-dense.
    o_ref[...] = y.reshape(o_ref.shape).astype(o_ref.dtype)


def _decoder_kernel_nomask(x_ref, w1_ref, b1_ref, w2_ref, b2_ref, w3_ref,
                           b3_ref, o_ref):
    y = _mlp3(x_ref, w1_ref, b1_ref, w2_ref, b2_ref, w3_ref, b3_ref)
    o_ref[...] = y.reshape(o_ref.shape).astype(o_ref.dtype)


def _round_up(n, m):
    return ((n + m - 1) // m) * m


def decoder_forward(x, params, mask=None, *, tile_rows=2048):
    """x: (B, T, phone_dim + 1).  mask: optional, broadcastable to (B, T, 1)
    (a (B, T) mask is also accepted and gets a trailing dim added)."""
    w1, b1, w2, b2, w3, b3 = params
    B, T, Pp1 = x.shape
    P, H = w1.shape          # (phone_dim, 2*hid_dim)
    M = w3.shape[1]          # mel_dim
    assert Pp1 == P + 1, "input feature dim must be phone_dim + 1"

    dtype = x.dtype
    rows = B * T

    # Lane-dense output fold: pack `fold` consecutive output rows (each M wide)
    # into one 128-lane row.  Only possible when M divides 128.
    fold = 128 // M if (M < 128 and 128 % M == 0) else 1
    row_granularity = 8 * fold          # sublane constraint on the folded block

    # Tile sizing: large tiles amortize the ~0.35us/step pipeline overhead, but
    # keep >=2 grid steps when there is enough work so "parallel" can feed both
    # TensorCores on v7x.  Never over-tile tiny inputs.
    tile_rows = max(row_granularity, _round_up(int(tile_rows), row_granularity))
    tile_rows = min(tile_rows, _round_up(rows, row_granularity))
    n_steps = pl.cdiv(rows, tile_rows)
    if n_steps < 2 and rows > 2 * row_granularity:
        tile_rows = max(row_granularity,
                        _round_up(-(-rows // 2), row_granularity))
        n_steps = pl.cdiv(rows, tile_rows)
    grid = (n_steps,)

    # Flatten (B, T) -> rows (contiguous reshape: no HBM copy, no padding).
    x2 = x.reshape(rows, Pp1)

    m2 = None
    if mask is not None:
        if mask.ndim == 2:
            mask = mask[..., None]
        m2 = jnp.broadcast_to(mask, (B, T, 1)).reshape(rows, 1).astype(dtype)

    # Fold the "drop channel 0" into W1 via a zero first row (tiny, done once).
    w1p = jnp.concatenate([jnp.zeros((1, H), w1.dtype), w1], axis=0)  # (P+1, H)
    b1_2 = b1.reshape(1, H)
    b2_2 = b2.reshape(1, H)
    b3_2 = b3.reshape(1, M)

    x_spec = pl.BlockSpec((tile_rows, Pp1), lambda i: (i, 0))   # full last dim
    weight_specs = [
        pl.BlockSpec((P + 1, H), lambda i: (0, 0)),             # w1 (resident)
        pl.BlockSpec((1, H), lambda i: (0, 0)),                 # b1
        pl.BlockSpec((H, H), lambda i: (0, 0)),                 # w2
        pl.BlockSpec((1, H), lambda i: (0, 0)),                 # b2
        pl.BlockSpec((H, M), lambda i: (0, 0)),                 # w3
        pl.BlockSpec((1, M), lambda i: (0, 0)),                 # b3
    ]
    mask_spec = pl.BlockSpec((tile_rows, 1), lambda i: (i, 0))

    # Rough double-buffered VMEM estimate (lane-padded).  Only set an explicit
    # limit for very large tiles; the defaults cover the normal case.
    itemsize = jnp.dtype(dtype).itemsize
    lane_pad = lambda d: _round_up(max(d, 1), 128)
    per_step = tile_rows * lane_pad(Pp1) * itemsize
    per_step += (tile_rows // fold) * lane_pad(fold * M) * itemsize
    if mask is not None:
        per_step += tile_rows * lane_pad(1) * itemsize
    est_vmem = 2 * per_step + (1 << 20)
    cp_kwargs = dict(dimension_semantics=("parallel",))
    if est_vmem > 12 * 1024 * 1024:
        cp_kwargs["vmem_limit_bytes"] = min(int(est_vmem * 3 // 2), 96 << 20)
    cparams = pltpu.CompilerParams(**cp_kwargs)

    kernel = _decoder_kernel_nomask if mask is None else _decoder_kernel_masked
    args = (x2, w1p, b1_2, w2, b2_2, w3, b3_2) + (() if mask is None else (m2,))
    in_specs_base = [x_spec] + weight_specs + ([] if mask is None else [mask_spec])

    def _run(fold_):
        if fold_ > 1:
            out_rows_ = _round_up(rows, fold_)
            out_struct = jax.ShapeDtypeStruct((out_rows_ // fold_, fold_ * M), dtype)
            out_spec = pl.BlockSpec((tile_rows // fold_, fold_ * M),
                                    lambda i: (i, 0))
        else:
            out_rows_ = rows
            out_struct = jax.ShapeDtypeStruct((rows, M), dtype)
            out_spec = pl.BlockSpec((tile_rows, M), lambda i: (i, 0))
        out_ = pl.pallas_call(
            kernel,
            out_shape=out_struct,
            grid_spec=pltpu.PrefetchScalarGridSpec(
                num_scalar_prefetch=0,
                grid=grid,
                in_specs=in_specs_base,
                out_specs=out_spec),
            compiler_params=cparams,
        )(*args)
        return out_, out_rows_, fold_

    if fold > 1:
        try:
            out, out_rows, used_fold = _run(fold)
        except Exception:
            # Fallback only if this Mosaic build cannot lower the
            # (TM, M) -> (TM/fold, 128) in-kernel fold; keeps the kernel
            # runnable everywhere at the cost of lane-sparse stores.
            out, out_rows, used_fold = _run(1)
    else:
        out, out_rows, used_fold = _run(1)

    if used_fold > 1:
        out = out.reshape(out_rows, M)      # free row-major metadata reshape
    if out_rows != rows:
        out = out[:rows]                    # only when rows % fold != 0
    return out.reshape(B, T, M)


def init_decoder_params(key, mel_dim, hid_dim, phone_dim, dtype=jnp.float32):
    """Deterministic init matching the PyTorch module's layer shapes
    (nn.Linear default: U(-1/sqrt(fan_in), 1/sqrt(fan_in)))."""
    hid = hid_dim * 2
    shapes = [(phone_dim, hid), (hid, hid), (hid, mel_dim)]
    params = []
    for (fan_in, fan_out) in shapes:
        key, kw, kb = jax.random.split(key, 3)
        bound = 1.0 / (fan_in ** 0.5)
        w = jax.random.uniform(kw, (fan_in, fan_out), dtype, -bound, bound)
        b = jax.random.uniform(kb, (fan_out,), dtype, -bound, bound)
        params += [w, b]
    return tuple(params)


def decoder_reference(x, params, mask=None):
    """Pure-JAX reference for correctness checking."""
    w1, b1, w2, b2, w3, b3 = params
    x = x[:, :, 1:]
    h = jnp.dot(x, w1) + b1
    h = jnp.where(h > 0, h, 0.01 * h)
    h = jnp.dot(h, w2) + b2
    h = jnp.where(h > 0, h, 0.01 * h)
    y = jnp.dot(h, w3) + b3
    if mask is not None:
        y = y * mask
    return y


if __name__ == "__main__":
    mel_dim, hid_dim, phone_dim = 16, 16, 32   # H = 2*hid = 32
    B, T = 2, 32                               # 64 rows

    key = jax.random.PRNGKey(0)
    kx, km, kp = jax.random.split(key, 3)

    x = jax.random.normal(kx, (B, T, phone_dim + 1), jnp.float32)
    mask = (jax.random.uniform(km, (B, T, 1)) > 0.3).astype(jnp.float32)
    params = init_decoder_params(kp, mel_dim, hid_dim, phone_dim)

    # masked path
    out = jax.block_until_ready(decoder_forward(x, params, mask))
    ref = decoder_reference(x, params, mask)
    assert out.shape == (B, T, mel_dim)
    assert jnp.allclose(out, ref, atol=1e-4, rtol=1e-4), "masked path mismatch"

    # un-masked path (separate kernel variant, no dummy ones mask)
    out_nm = jax.block_until_ready(decoder_forward(x, params, None))
    ref_nm = decoder_reference(x, params, None)
    assert jnp.allclose(out_nm, ref_nm, atol=1e-4, rtol=1e-4), "unmasked mismatch"

    # non-divisible row count -> exercises the ragged last block + output slice
    B2, T2 = 3, 50                             # 150 rows, tile_rows=64 -> 3 steps
    kx2, km2 = jax.random.split(jax.random.PRNGKey(1))
    x2 = jax.random.normal(kx2, (B2, T2, phone_dim + 1), jnp.float32)
    mask2 = (jax.random.uniform(km2, (B2, T2, 1)) > 0.3).astype(jnp.float32)
    out2 = jax.block_until_ready(decoder_forward(x2, params, mask2, tile_rows=64))
    ref2 = decoder_reference(x2, params, mask2)
    assert out2.shape == (B2, T2, mel_dim)
    assert jnp.allclose(out2, ref2, atol=1e-4, rtol=1e-4), "ragged path mismatch"

    print("KERNEL_OK")
</pallas_src>

<mosaic_0001>
module attributes {stable_mosaic.version = 11 : i64} {
  func.func @_decoder_kernel_masked(%arg0: i32, %arg1: memref<64x33xf32, #tpu.memory_space<vmem>>, %arg2: memref<33x32xf32, #tpu.memory_space<vmem>>, %arg3: memref<1x32xf32, #tpu.memory_space<vmem>>, %arg4: memref<32x32xf32, #tpu.memory_space<vmem>>, %arg5: memref<1x32xf32, #tpu.memory_space<vmem>>, %arg6: memref<32x16xf32, #tpu.memory_space<vmem>>, %arg7: memref<1x16xf32, #tpu.memory_space<vmem>>, %arg8: memref<64x1xf32, #tpu.memory_space<vmem>>, %arg9: memref<8x128xf32, #tpu.memory_space<vmem>>) attributes {dimension_semantics = [#tpu.dimension_semantics<parallel>], iteration_bounds = array<i64: 1>, scalar_prefetch = 0 : i64, scratch_operands = 0 : i64, tpu.core_type = #tpu.core_type<tc>, window_params = [{transform_indices = @transform_0, window_bounds = array<i64: 64, 33>}, {pipeline_mode = #tpu.pipeline_mode<synchronous>, transform_indices = @transform_1, window_bounds = array<i64: 33, 32>}, {pipeline_mode = #tpu.pipeline_mode<synchronous>, transform_indices = @transform_2, window_bounds = array<i64: 1, 32>}, {pipeline_mode = #tpu.pipeline_mode<synchronous>, transform_indices = @transform_3, window_bounds = array<i64: 32, 32>}, {pipeline_mode = #tpu.pipeline_mode<synchronous>, transform_indices = @transform_4, window_bounds = array<i64: 1, 32>}, {pipeline_mode = #tpu.pipeline_mode<synchronous>, transform_indices = @transform_5, window_bounds = array<i64: 32, 16>}, {pipeline_mode = #tpu.pipeline_mode<synchronous>, transform_indices = @transform_6, window_bounds = array<i64: 1, 16>}, {transform_indices = @transform_7, window_bounds = array<i64: 64, 1>}, {transform_indices = @transform_8, window_bounds = array<i64: 8, 128>}]} {
    %c0 = arith.constant 0 : index
    %c0_0 = arith.constant 0 : index
    %0 = vector.load %arg1[%c0, %c0_0] : memref<64x33xf32, #tpu.memory_space<vmem>>, vector<64x33xf32>
    %c0_1 = arith.constant 0 : index
    %c0_2 = arith.constant 0 : index
    %1 = vector.load %arg2[%c0_1, %c0_2] : memref<33x32xf32, #tpu.memory_space<vmem>>, vector<33x32xf32>
    %cst = arith.constant dense<0.000000e+00> : vector<64x32xf32>
    %2 = tpu.matmul %0, %1, %cst {dimension_numbers = #tpu.dot_dimension_numbers<[1], [0], [0], [1], [0, 0, 1, 1], [], []>} : vector<64x33xf32>, vector<33x32xf32>, vector<64x32xf32> -> vector<64x32xf32>
    %c0_3 = arith.constant 0 : index
    %c0_4 = arith.constant 0 : index
    %3 = vector.load %arg3[%c0_3, %c0_4] : memref<1x32xf32, #tpu.memory_space<vmem>>, vector<1x32xf32>
    %4 = vector.broadcast %3 : vector<1x32xf32> to vector<64x32xf32>
    %5 = arith.addf %2, %4 : vector<64x32xf32>
    %cst_5 = arith.constant 0.00999999977 : f32
    %6 = vector.broadcast %cst_5 : f32 to vector<64x32xf32>
    %7 = arith.mulf %6, %5 : vector<64x32xf32>
    %8 = arith.maximumf %5, %7 : vector<64x32xf32>
    %c0_6 = arith.constant 0 : index
    %c0_7 = arith.constant 0 : index
    %9 = vector.load %arg4[%c0_6, %c0_7] : memref<32x32xf32, #tpu.memory_space<vmem>>, vector<32x32xf32>
    %cst_8 = arith.constant dense<0.000000e+00> : vector<64x32xf32>
    %10 = tpu.matmul %8, %9, %cst_8 {dimension_numbers = #tpu.dot_dimension_numbers<[1], [0], [0], [1], [0, 0, 1, 1], [], []>} : vector<64x32xf32>, vector<32x32xf32>, vector<64x32xf32> -> vector<64x32xf32>
    %c0_9 = arith.constant 0 : index
    %c0_10 = arith.constant 0 : index
    %11 = vector.load %arg5[%c0_9, %c0_10] : memref<1x32xf32, #tpu.memory_space<vmem>>, vector<1x32xf32>
    %12 = vector.broadcast %11 : vector<1x32xf32> to vector<64x32xf32>
    %13 = arith.addf %10, %12 : vector<64x32xf32>
    %cst_11 = arith.constant 0.00999999977 : f32
    %14 = vector.broadcast %cst_11 : f32 to vector<64x32xf32>
    %15 = arith.mulf %14, %13 : vector<64x32xf32>
    %16 = arith.maximumf %13, %15 : vector<64x32xf32>
    %c0_12 = arith.constant 0 : index
    %c0_13 = arith.constant 0 : index
    %17 = vector.load %arg6[%c0_12, %c0_13] : memref<32x16xf32, #tpu.memory_space<vmem>>, vector<32x16xf32>
    %cst_14 = arith.constant dense<0.000000e+00> : vector<64x16xf32>
    %18 = tpu.matmul %16, %17, %cst_14 {dimension_numbers = #tpu.dot_dimension_numbers<[1], [0], [0], [1], [0, 0, 1, 1], [], []>} : vector<64x32xf32>, vector<32x16xf32>, vector<64x16xf32> -> vector<64x16xf32>
    %c0_15 = arith.constant 0 : index
    %c0_16 = arith.constant 0 : index
    %19 = vector.load %arg7[%c0_15, %c0_16] : memref<1x16xf32, #tpu.memory_space<vmem>>, vector<1x16xf32>
    %20 = vector.broadcast %19 : vector<1x16xf32> to vector<64x16xf32>
    %21 = arith.addf %18, %20 : vector<64x16xf32>
    %c0_17 = arith.constant 0 : index
    %c0_18 = arith.constant 0 : index
    %22 = vector.load %arg8[%c0_17, %c0_18] : memref<64x1xf32, #tpu.memory_space<vmem>>, vector<64x1xf32>
    %23 = vector.broadcast %22 : vector<64x1xf32> to vector<64x16xf32>
    %24 = arith.mulf %21, %23 : vector<64x16xf32>
    %25 = vector.shape_cast %24 : vector<64x16xf32> to vector<8x128xf32>
    %c0_19 = arith.constant 0 : index
    %c0_20 = arith.constant 0 : index
    %26 = vector.load %arg9[%c0_19, %c0_20] : memref<8x128xf32, #tpu.memory_space<vmem>>, vector<8x128xf32>
    tpu.vector_store %arg9[%c0_19, %c0_20], %25 {strides = array<i32>} : memref<8x128xf32, #tpu.memory_space<vmem>>, vector<8x128xf32>,
    return
  }
  func.func @transform_0(%arg0: i32) -> (i32, i32) {
    %c0_i32 = arith.constant 0 : i32
    %c0_i32_0 = arith.constant 0 : i32
    return %arg0, %c0_i32 : i32, i32
  }
  func.func @transform_1(%arg0: i32) -> (i32, i32) {
    %c0_i32 = arith.constant 0 : i32
    %c0_i32_0 = arith.constant 0 : i32
    %c0_i32_1 = arith.constant 0 : i32
    return %c0_i32, %c0_i32_0 : i32, i32
  }
  func.func @transform_2(%arg0: i32) -> (i32, i32) {
    %c0_i32 = arith.constant 0 : i32
    %c0_i32_0 = arith.constant 0 : i32
    %c0_i32_1 = arith.constant 0 : i32
    return %c0_i32, %c0_i32_0 : i32, i32
  }
  func.func @transform_3(%arg0: i32) -> (i32, i32) {
    %c0_i32 = arith.constant 0 : i32
    %c0_i32_0 = arith.constant 0 : i32
    %c0_i32_1 = arith.constant 0 : i32
    return %c0_i32, %c0_i32_0 : i32, i32
  }
  func.func @transform_4(%arg0: i32) -> (i32, i32) {
    %c0_i32 = arith.constant 0 : i32
    %c0_i32_0 = arith.constant 0 : i32
    %c0_i32_1 = arith.constant 0 : i32
    return %c0_i32, %c0_i32_0 : i32, i32
  }
  func.func @transform_5(%arg0: i32) -> (i32, i32) {
    %c0_i32 = arith.constant 0 : i32
    %c0_i32_0 = arith.constant 0 : i32
    %c0_i32_1 = arith.constant 0 : i32
    return %c0_i32, %c0_i32_0 : i32, i32
  }
  func.func @transform_6(%arg0: i32) -> (i32, i32) {
    %c0_i32 = arith.constant 0 : i32
    %c0_i32_0 = arith.constant 0 : i32
    %c0_i32_1 = arith.constant 0 : i32
    return %c0_i32, %c0_i32_0 : i32, i32
  }
  func.func @transform_7(%arg0: i32) -> (i32, i32) {
    %c0_i32 = arith.constant 0 : i32
    %c0_i32_0 = arith.constant 0 : i32
    return %arg0, %c0_i32 : i32, i32
  }
  func.func @transform_8(%arg0: i32) -> (i32, i32) {
    %c0_i32 = arith.constant 0 : i32
    %c0_i32_0 = arith.constant 0 : i32
    return %arg0, %c0_i32 : i32, i32
  }
}

module attributes {stable_mosaic.version = 11 : i64} {
  func.func @_decoder_kernel_masked(%arg0: i32, %arg1: memref<64x33xf32, #tpu.memory_space<vmem>>, %arg2: memref<33x32xf32, #tpu.memory_space<vmem>>, %arg3: memref<1x32xf32, #tpu.memory_space<vmem>>, %arg4: memref<32x32xf32, #tpu.memory_space<vmem>>, %arg5: memref<1x32xf32, #tpu.memory_space<vmem>>, %arg6: memref<32x16xf32, #tpu.memory_space<vmem>>, %arg7: memref<1x16xf32, #tpu.memory_space<vmem>>, %arg8: memref<64x1xf32, #tpu.memory_space<vmem>>, %arg9: memref<64x16xf32, #tpu.memory_space<vmem>>) attributes {dimension_semantics = [#tpu.dimension_semantics<parallel>], iteration_bounds = array<i64: 1>, scalar_prefetch = 0 : i64, scratch_operands = 0 : i64, tpu.core_type = #tpu.core_type<tc>, window_params = [{transform_indices = @transform_0, window_bounds = array<i64: 64, 33>}, {pipeline_mode = #tpu.pipeline_mode<synchronous>, transform_indices = @transform_1, window_bounds = array<i64: 33, 32>}, {pipeline_mode = #tpu.pipeline_mode<synchronous>, transform_indices = @transform_2, window_bounds = array<i64: 1, 32>}, {pipeline_mode = #tpu.pipeline_mode<synchronous>, transform_indices = @transform_3, window_bounds = array<i64: 32, 32>}, {pipeline_mode = #tpu.pipeline_mode<synchronous>, transform_indices = @transform_4, window_bounds = array<i64: 1, 32>}, {pipeline_mode = #tpu.pipeline_mode<synchronous>, transform_indices = @transform_5, window_bounds = array<i64: 32, 16>}, {pipeline_mode = #tpu.pipeline_mode<synchronous>, transform_indices = @transform_6, window_bounds = array<i64: 1, 16>}, {transform_indices = @transform_7, window_bounds = array<i64: 64, 1>}, {transform_indices = @transform_8, window_bounds = array<i64: 64, 16>}]} {
    %c0 = arith.constant 0 : index
    %c0_0 = arith.constant 0 : index
    %0 = vector.load %arg1[%c0, %c0_0] : memref<64x33xf32, #tpu.memory_space<vmem>>, vector<64x33xf32>
    %c0_1 = arith.constant 0 : index
    %c0_2 = arith.constant 0 : index
    %1 = vector.load %arg2[%c0_1, %c0_2] : memref<33x32xf32, #tpu.memory_space<vmem>>, vector<33x32xf32>
    %cst = arith.constant dense<0.000000e+00> : vector<64x32xf32>
    %2 = tpu.matmul %0, %1, %cst {dimension_numbers = #tpu.dot_dimension_numbers<[1], [0], [0], [1], [0, 0, 1, 1], [], []>} : vector<64x33xf32>, vector<33x32xf32>, vector<64x32xf32> -> vector<64x32xf32>
    %c0_3 = arith.constant 0 : index
    %c0_4 = arith.constant 0 : index
    %3 = vector.load %arg3[%c0_3, %c0_4] : memref<1x32xf32, #tpu.memory_space<vmem>>, vector<1x32xf32>
    %4 = vector.broadcast %3 : vector<1x32xf32> to vector<64x32xf32>
    %5 = arith.addf %2, %4 : vector<64x32xf32>
    %cst_5 = arith.constant 0.00999999977 : f32
    %6 = vector.broadcast %cst_5 : f32 to vector<64x32xf32>
    %7 = arith.mulf %6, %5 : vector<64x32xf32>
    %8 = arith.maximumf %5, %7 : vector<64x32xf32>
    %c0_6 = arith.constant 0 : index
    %c0_7 = arith.constant 0 : index
    %9 = vector.load %arg4[%c0_6, %c0_7] : memref<32x32xf32, #tpu.memory_space<vmem>>, vector<32x32xf32>
    %cst_8 = arith.constant dense<0.000000e+00> : vector<64x32xf32>
    %10 = tpu.matmul %8, %9, %cst_8 {dimension_numbers = #tpu.dot_dimension_numbers<[1], [0], [0], [1], [0, 0, 1, 1], [], []>} : vector<64x32xf32>, vector<32x32xf32>, vector<64x32xf32> -> vector<64x32xf32>
    %c0_9 = arith.constant 0 : index
    %c0_10 = arith.constant 0 : index
    %11 = vector.load %arg5[%c0_9, %c0_10] : memref<1x32xf32, #tpu.memory_space<vmem>>, vector<1x32xf32>
    %12 = vector.broadcast %11 : vector<1x32xf32> to vector<64x32xf32>
    %13 = arith.addf %10, %12 : vector<64x32xf32>
    %cst_11 = arith.constant 0.00999999977 : f32
    %14 = vector.broadcast %cst_11 : f32 to vector<64x32xf32>
    %15 = arith.mulf %14, %13 : vector<64x32xf32>
    %16 = arith.maximumf %13, %15 : vector<64x32xf32>
    %c0_12 = arith.constant 0 : index
    %c0_13 = arith.constant 0 : index
    %17 = vector.load %arg6[%c0_12, %c0_13] : memref<32x16xf32, #tpu.memory_space<vmem>>, vector<32x16xf32>
    %cst_14 = arith.constant dense<0.000000e+00> : vector<64x16xf32>
    %18 = tpu.matmul %16, %17, %cst_14 {dimension_numbers = #tpu.dot_dimension_numbers<[1], [0], [0], [1], [0, 0, 1, 1], [], []>} : vector<64x32xf32>, vector<32x16xf32>, vector<64x16xf32> -> vector<64x16xf32>
    %c0_15 = arith.constant 0 : index
    %c0_16 = arith.constant 0 : index
    %19 = vector.load %arg7[%c0_15, %c0_16] : memref<1x16xf32, #tpu.memory_space<vmem>>, vector<1x16xf32>
    %20 = vector.broadcast %19 : vector<1x16xf32> to vector<64x16xf32>
    %21 = arith.addf %18, %20 : vector<64x16xf32>
    %c0_17 = arith.constant 0 : index
    %c0_18 = arith.constant 0 : index
    %22 = vector.load %arg8[%c0_17, %c0_18] : memref<64x1xf32, #tpu.memory_space<vmem>>, vector<64x1xf32>
    %23 = vector.broadcast %22 : vector<64x1xf32> to vector<64x16xf32>
    %24 = arith.mulf %21, %23 : vector<64x16xf32>
    %c0_19 = arith.constant 0 : index
    %c0_20 = arith.constant 0 : index
    %25 = vector.load %arg9[%c0_19, %c0_20] : memref<64x16xf32, #tpu.memory_space<vmem>>, vector<64x16xf32>
    tpu.vector_store %arg9[%c0_19, %c0_20], %24 {strides = array<i32>} : memref<64x16xf32, #tpu.memory_space<vmem>>, vector<64x16xf32>,
    return
  }
  func.func @transform_0(%arg0: i32) -> (i32, i32) {
    %c0_i32 = arith.constant 0 : i32
    %c0_i32_0 = arith.constant 0 : i32
    return %arg0, %c0_i32 : i32, i32
  }
  func.func @transform_1(%arg0: i32) -> (i32, i32) {
    %c0_i32 = arith.constant 0 : i32
    %c0_i32_0 = arith.constant 0 : i32
    %c0_i32_1 = arith.constant 0 : i32
    return %c0_i32, %c0_i32_0 : i32, i32
  }
  func.func @transform_2(%arg0: i32) -> (i32, i32) {
    %c0_i32 = arith.constant 0 : i32
    %c0_i32_0 = arith.constant 0 : i32
    %c0_i32_1 = arith.constant 0 : i32
    return %c0_i32, %c0_i32_0 : i32, i32
  }
  func.func @transform_3(%arg0: i32) -> (i32, i32) {
    %c0_i32 = arith.constant 0 : i32
    %c0_i32_0 = arith.constant 0 : i32
    %c0_i32_1 = arith.constant 0 : i32
    return %c0_i32, %c0_i32_0 : i32, i32
  }
  func.func @transform_4(%arg0: i32) -> (i32, i32) {
    %c0_i32 = arith.constant 0 : i32
    %c0_i32_0 = arith.constant 0 : i32
    %c0_i32_1 = arith.constant 0 : i32
    return %c0_i32, %c0_i32_0 : i32, i32
  }
  func.func @transform_5(%arg0: i32) -> (i32, i32) {
    %c0_i32 = arith.constant 0 : i32
    %c0_i32_0 = arith.constant 0 : i32
    %c0_i32_1 = arith.constant 0 : i32
    return %c0_i32, %c0_i32_0 : i32, i32
  }
  func.func @transform_6(%arg0: i32) -> (i32, i32) {
    %c0_i32 = arith.constant 0 : i32
    %c0_i32_0 = arith.constant 0 : i32
    %c0_i32_1 = arith.constant 0 : i32
    return %c0_i32, %c0_i32_0 : i32, i32
  }
  func.func @transform_7(%arg0: i32) -> (i32, i32) {
    %c0_i32 = arith.constant 0 : i32
    %c0_i32_0 = arith.constant 0 : i32
    return %arg0, %c0_i32 : i32, i32
  }
  func.func @transform_8(%arg0: i32) -> (i32, i32) {
    %c0_i32 = arith.constant 0 : i32
    %c0_i32_0 = arith.constant 0 : i32
    return %arg0, %c0_i32 : i32, i32
  }
}

</mosaic_0001>

<llo_original>
// kernel: tpu_custom_call.1
$region0: #{tpu_custom_call.1}
  #allocation0 [shape = 'u32[]', space=smem, size = 0x4, offset = 0x4, fixed_abs, tag = 'smem constant byte address 0x4 - core index']
  #allocation1 [shape = 'u32[144,128]{1,0:T(1,128)}', space=vmem, size = 0x12000, scoped, tag = 'internal scratch']
  %s0 = inlined_call_operand.vmem [shape: f32[64,33], index: 0, kind: input, shape index: {}]
  %s1 = inlined_call_operand.vmem [shape: f32[33,32], index: 1, kind: input, shape index: {}]
  %s2 = inlined_call_operand.vmem [shape: f32[1,32], index: 2, kind: input, shape index: {}]
  %s3 = inlined_call_operand.vmem [shape: f32[32,32], index: 3, kind: input, shape index: {}]
  %s4 = inlined_call_operand.vmem [shape: f32[1,32], index: 4, kind: input, shape index: {}]
  %s5 = inlined_call_operand.vmem [shape: f32[32,16], index: 5, kind: input, shape index: {}]
  %s6 = inlined_call_operand.vmem [shape: f32[1,16], index: 6, kind: input, shape index: {}]
  %s7 = inlined_call_operand.vmem [shape: f32[64,1], index: 7, kind: input, shape index: {}]
  %s8 = inlined_call_operand.vmem [shape: f32[64,16], index: 8, kind: output, shape index: {}]
  %s9 = sld [smem:[#allocation0]]
  $region42: #{tpu_custom_call.1} parent=0
    _
  %s11 = ssub.s32 1, %s9
  %s12 = scalar_select 0, %s11, %s9
  // Predicated region
  $region2: #{tpu_custom_call.1} parent=0 // pred_check
    _
  $region3: #{tpu_custom_call.1} parent=0 // pred_check_branch
    %14 = sbr.rel (0) target = $region5
  $region4: #{tpu_custom_call.1} parent=0 // pred_region
    _
  $region5: #{tpu_custom_call.1} parent=0 // pred_fallthru
    _
  // Predicated region
  $region6: #{tpu_custom_call.1} parent=0 // pred_check
    _
  $region7: #{tpu_custom_call.1} parent=0 // pred_check_branch
    %16 = sbr.rel (0) target = $region9
  $region8: #{tpu_custom_call.1} parent=0 // pred_region
    _
  $region9: #{tpu_custom_call.1} parent=0 // pred_fallthru
    _
  // Predicated region
  $region10: #{tpu_custom_call.1} parent=0 // pred_check
    _
  $region11: #{tpu_custom_call.1} parent=0 // pred_check_branch
    %18 = sbr.rel (0) target = $region13
  $region12: #{tpu_custom_call.1} parent=0 // pred_region
    _
  $region13: #{tpu_custom_call.1} parent=0 // pred_fallthru
    _
  // Predicated region
  $region14: #{tpu_custom_call.1} parent=0 // pred_check
    _
  $region15: #{tpu_custom_call.1} parent=0 // pred_check_branch
    %20 = sbr.rel (0) target = $region17
  $region16: #{tpu_custom_call.1} parent=0 // pred_region
    _
  $region17: #{tpu_custom_call.1} parent=0 // pred_fallthru
    _
  // Predicated region
  $region18: #{tpu_custom_call.1} parent=0 // pred_check
    _
  $region19: #{tpu_custom_call.1} parent=0 // pred_check_branch
    %22 = sbr.rel (0) target = $region21
  $region20: #{tpu_custom_call.1} parent=0 // pred_region
    _
  $region21: #{tpu_custom_call.1} parent=0 // pred_fallthru
    _
  // Predicated region
  $region22: #{tpu_custom_call.1} parent=0 // pred_check
    _
  $region23: #{tpu_custom_call.1} parent=0 // pred_check_branch
    %24 = sbr.rel (0) target = $region25
  $region24: #{tpu_custom_call.1} parent=0 // pred_region
    _
  $region25: #{tpu_custom_call.1} parent=0 // pred_fallthru
    _
  // Predicated region
  $region26: #{tpu_custom_call.1} parent=0 // pred_check
    _
  $region27: #{tpu_custom_call.1} parent=0 // pred_check_branch
    %26 = sbr.rel (0) target = $region29
  $region28: #{tpu_custom_call.1} parent=0 // pred_region
    _
  $region29: #{tpu_custom_call.1} parent=0 // pred_fallthru
    _
  // Predicated region
  $region30: #{tpu_custom_call.1} parent=0 // pred_check
    _
  $region31: #{tpu_custom_call.1} parent=0 // pred_check_branch
    %28 = sbr.rel (0) target = $region33
  $region32: #{tpu_custom_call.1} parent=0 // pred_region
    _
  $region33: #{tpu_custom_call.1} parent=0 // pred_fallthru
    _
  %v29 = vld [vmem:[%s0] sm:$0xff]
  %v30 = vld [vmem:[%s0 + $0x8] sm:$0xff]
  %v31 = vld [vmem:[%s0 + $0x10] sm:$0xff]
  %v32 = vld [vmem:[%s0 + $0x18] sm:$0xff]
  %v33 = vld [vmem:[%s0 + $0x20] sm:$0xff]
  %v34 = vld [vmem:[%s0 + $0x28] sm:$0xff]
  %v35 = vld [vmem:[%s0 + $0x30] sm:$0xff]
  %v36 = vld [vmem:[%s0 + $0x38] sm:$0xff]
  %v37 = vld [vmem:[%s1] sm:$0xff]
  %v38 = vld [vmem:[%s1 + $0x8] sm:$0xff]
  %v39 = vld [vmem:[%s1 + $0x10] sm:$0xff]
  %v40 = vld [vmem:[%s1 + $0x18] sm:$0xff]
  %v41 = vld [vmem:[%s1 + $0x20] sm:$0x1]
  %v42 = vld [vmem:[%s2] sm:$0x1]
  %v44 = vlaneseq
  %v45 = vshrl.u32 %v44, 7
  %v46 = vsub.s32 0, %v45
  %v47 = vrot.slane %v42, %v46
  %vm49 = vcmask 269312
  %v51 = vsel %vm49, %v29, 0
  %v54 = vsel %vm49, %v30, 0
  %v57 = vsel %vm49, %v31, 0
  %v60 = vsel %vm49, %v32, 0
  %v63 = vsel %vm49, %v33, 0
  %v66 = vsel %vm49, %v34, 0
  %v69 = vsel %vm49, %v35, 0
  %v72 = vsel %vm49, %v36, 0
  %vm74 = vcmask 1040384
  %v76 = vsel %vm74, %v41, 0
  %78 = vmatprep.subr.mxu0 0.0
  %79 = vmatpush1.msra.mxu0 0.0
  %80 = vmatprep.subr.mxu0 0.0
  %81 = vmatpush1.msra.mxu0 0.0
  %82 = vmatprep.subr.mxu0 0.0
  %83 = vmatpush1.msra.mxu0 0.0
  %84 = vmatprep.subr.mxu0 0.0
  %85 = vmatpush1.msra.mxu0 0.0
  %86 = vmatprep.subr.mxu0 0.0
  %87 = vmatpush1.msra.mxu0 0.0
  %88 = vmatprep.subr.mxu0 0.0
  %89 = vmatpush1.msra.mxu0 0.0
  %90 = vmatprep.subr.mxu0 0.0
  %91 = vmatpush1.msra.mxu0 0.0
  %92 = vmatprep.subr.mxu0 0.0
  %93 = vmatpush1.msra.mxu0 0.0
  %94 = vmatprep.subr.mxu0 0.0
  %95 = vmatpush1.msra.mxu0 0.0
  %96 = vmatprep.subr.mxu0 0.0
  %97 = vmatpush1.msra.mxu0 0.0
  %98 = vmatprep.subr.mxu0 0.0
  %99 = vmatpush1.msra.mxu0 0.0
  %100 = vmatprep.subr.mxu0 0.0
  %101 = vmatpush1.msra.mxu0 %v76
  %102 = vmatprep.subr.mxu0 0.0
  %103 = vmatpush1.msra.mxu0 %v40
  %104 = vmatprep.subr.mxu0 0.0
  %105 = vmatpush1.msra.mxu0 %v39
  %106 = vmatprep.subr.mxu0 0.0
  %107 = vmatpush1.msra.mxu0 %v38
  %108 = vmatprep.subr.mxu0 0.0
  %109 = vmatpush1.msra.mxu0 %v37
  %110 = vmatprep.subr.mxu0 0.0
  %111 = vmatpush2.msra.mxu0 0.0
  %112 = vmatprep.subr.mxu0 0.0
  %113 = vmatpush2.msra.mxu0 0.0
  %114 = vmatprep.subr.mxu0 0.0
  %115 = vmatpush2.msra.mxu0 0.0
  %116 = vmatprep.subr.mxu0 0.0
  %117 = vmatpush2.msra.mxu0 0.0
  %118 = vmatprep.subr.mxu0 0.0
  %119 = vmatpush2.msra.mxu0 0.0
  %120 = vmatprep.subr.mxu0 0.0
  %121 = vmatpush2.msra.mxu0 0.0
  %122 = vmatprep.subr.mxu0 0.0
  %123 = vmatpush2.msra.mxu0 0.0
  %124 = vmatprep.subr.mxu0 0.0
  %125 = vmatpush2.msra.mxu0 0.0
  %126 = vmatprep.subr.mxu0 0.0
  %127 = vmatpush2.msra.mxu0 0.0
  %128 = vmatprep.subr.mxu0 0.0
  %129 = vmatpush2.msra.mxu0 0.0
  %130 = vmatprep.subr.mxu0 0.0
  %131 = vmatpush2.msra.mxu0 0.0
  %132 = vmatprep.subr.mxu0 0.0
  %133 = vmatpush2.msra.mxu0 0.0
  %134 = vmatprep.subr.mxu0 0.0
  %135 = vmatpush2.msra.mxu0 0.0
  %136 = vmatprep.subr.mxu0 0.0
  %137 = vmatpush2.msra.mxu0 0.0
  %138 = vmatprep.subr.mxu0 0.0
  %139 = vmatpush2.msra.mxu0 0.0
  %140 = vmatprep.subr.mxu0 0.0
  %141 = vmatpush2.msra.mxu0 0.0
  %142 = vmatprep.mubr.f32.mxu0 0.0
  %143 = vmatmul.mubr.f32.gmra.mxu0 %v51
  %v144 = vpop.f32.mrf.mxu0
  %v145 = vadd.f32 %v47, %v144
  %v146 = vpop.f32.mrf.mxu0
  %147 = vmatprep.mubr.f32.mxu0 0.0
  %148 = vmatmul.mubr.f32.gmra.mxu0 %v54
  %v149 = vpop.f32.mrf.mxu0
  %v150 = vadd.f32 %v47, %v149
  %v151 = vpop.f32.mrf.mxu0
  %152 = vmatprep.mubr.f32.mxu0 0.0
  %153 = vmatmul.mubr.f32.gmra.mxu0 %v57
  %v154 = vpop.f32.mrf.mxu0
  %v155 = vadd.f32 %v47, %v154
  %v156 = vpop.f32.mrf.mxu0
  %157 = vmatprep.mubr.f32.mxu0 0.0
  %158 = vmatmul.mubr.f32.gmra.mxu0 %v60
  %v159 = vpop.f32.mrf.mxu0
  %v160 = vadd.f32 %v47, %v159
  %v161 = vpop.f32.mrf.mxu0
  %162 = vmatprep.mubr.f32.mxu0 0.0
  %163 = vmatmul.mubr.f32.gmra.mxu0 %v63
  %v164 = vpop.f32.mrf.mxu0
  %v165 = vadd.f32 %v47, %v164
  %v166 = vpop.f32.mrf.mxu0
  %167 = vmatprep.mubr.f32.mxu0 0.0
  %168 = vmatmul.mubr.f32.gmra.mxu0 %v66
  %v169 = vpop.f32.mrf.mxu0
  %v170 = vadd.f32 %v47, %v169
  %v171 = vpop.f32.mrf.mxu0
  %172 = vmatprep.mubr.f32.mxu0 0.0
  %173 = vmatmul.mubr.f32.gmra.mxu0 %v69
  %v174 = vpop.f32.mrf.mxu0
  %v175 = vadd.f32 %v47, %v174
  %v176 = vpop.f32.mrf.mxu0
  %177 = vmatprep.mubr.f32.mxu0 0.0
  %178 = vmatmul.mubr.f32.gmra.mxu0 %v72
  %v179 = vpop.f32.mrf.mxu0
  %v180 = vadd.f32 %v47, %v179
  %v181 = vpop.f32.mrf.mxu0
  %182 = vdwg.mxu0
  %v183 = vmul.f32 %v145, 0.01
  %v184 = vmul.f32 %v150, 0.01
  %v185 = vmul.f32 %v155, 0.01
  %v186 = vmul.f32 %v160, 0.01
  %v187 = vmul.f32 %v165, 0.01
  %v188 = vmul.f32 %v170, 0.01
  %v189 = vmul.f32 %v175, 0.01
  %v190 = vmul.f32 %v180, 0.01
  %v191 = vmax.f32 %v145, %v183
  %v192 = vmax.f32 %v150, %v184
  %v193 = vmax.f32 %v155, %v185
  %v194 = vmax.f32 %v160, %v186
  %v195 = vmax.f32 %v165, %v187
  %v196 = vmax.f32 %v170, %v188
  %v197 = vmax.f32 %v175, %v189
  %v198 = vmax.f32 %v180, %v190
  %v199 = vld [vmem:[%s3] sm:$0xff]
  %v200 = vld [vmem:[%s3 + $0x8] sm:$0xff]
  %v201 = vld [vmem:[%s3 + $0x10] sm:$0xff]
  %v202 = vld [vmem:[%s3 + $0x18] sm:$0xff]
  %v203 = vld [vmem:[%s4] sm:$0x1]
  %v205 = vlaneseq
  %v206 = vshrl.u32 %v205, 7
  %v207 = vsub.s32 0, %v206
  %v208 = vrot.slane %v203, %v207
  %vm210 = vcmask 261120
  %v212 = vsel %vm210, %v191, 0
  %v215 = vsel %vm210, %v192, 0
  %v218 = vsel %vm210, %v193, 0
  %v221 = vsel %vm210, %v194, 0
  %v224 = vsel %vm210, %v195, 0
  %v227 = vsel %vm210, %v196, 0
  %v230 = vsel %vm210, %v197, 0
  %v233 = vsel %vm210, %v198, 0
  %235 = vmatprep.subr.mxu0 0.0
  %236 = vmatpush1.msra.mxu0 0.0
  %237 = vmatprep.subr.mxu0 0.0
  %238 = vmatpush1.msra.mxu0 0.0
  %239 = vmatprep.subr.mxu0 0.0
  %240 = vmatpush1.msra.mxu0 0.0
  %241 = vmatprep.subr.mxu0 0.0
  %242 = vmatpush1.msra.mxu0 0.0
  %243 = vmatprep.subr.mxu0 0.0
  %244 = vmatpush1.msra.mxu0 0.0
  %245 = vmatprep.subr.mxu0 0.0
  %246 = vmatpush1.msra.mxu0 0.0
  %247 = vmatprep.subr.mxu0 0.0
  %248 = vmatpush1.msra.mxu0 0.0
  %249 = vmatprep.subr.mxu0 0.0
  %250 = vmatpush1.msra.mxu0 0.0
  %251 = vmatprep.subr.mxu0 0.0
  %252 = vmatpush1.msra.mxu0 0.0
  %253 = vmatprep.subr.mxu0 0.0
  %254 = vmatpush1.msra.mxu0 0.0
  %255 = vmatprep.subr.mxu0 0.0
  %256 = vmatpush1.msra.mxu0 0.0
  %257 = vmatprep.subr.mxu0 0.0
  %258 = vmatpush1.msra.mxu0 0.0
  %259 = vmatprep.subr.mxu0 0.0
  %260 = vmatpush1.msra.mxu0 %v202
  %261 = vmatprep.subr.mxu0 0.0
  %262 = vmatpush1.msra.mxu0 %v201
  %263 = vmatprep.subr.mxu0 0.0
  %264 = vmatpush1.msra.mxu0 %v200
  %265 = vmatprep.subr.mxu0 0.0
  %266 = vmatpush1.msra.mxu0 %v199
  %267 = vmatprep.subr.mxu0 0.0
  %268 = vmatpush2.msra.mxu0 0.0
  %269 = vmatprep.subr.mxu0 0.0
  %270 = vmatpush2.msra.mxu0 0.0
  %271 = vmatprep.subr.mxu0 0.0
  %272 = vmatpush2.msra.mxu0 0.0
  %273 = vmatprep.subr.mxu0 0.0
  %274 = vmatpush2.msra.mxu0 0.0
  %275 = vmatprep.subr.mxu0 0.0
  %276 = vmatpush2.msra.mxu0 0.0
  %277 = vmatprep.subr.mxu0 0.0
  %278 = vmatpush2.msra.mxu0 0.0
  %279 = vmatprep.subr.mxu0 0.0
  %280 = vmatpush2.msra.mxu0 0.0
  %281 = vmatprep.subr.mxu0 0.0
  %282 = vmatpush2.msra.mxu0 0.0
  %283 = vmatprep.subr.mxu0 0.0
  %284 = vmatpush2.msra.mxu0 0.0
  %285 = vmatprep.subr.mxu0 0.0
  %286 = vmatpush2.msra.mxu0 0.0
  %287 = vmatprep.subr.mxu0 0.0
  %288 = vmatpush2.msra.mxu0 0.0
  %289 = vmatprep.subr.mxu0 0.0
  %290 = vmatpush2.msra.mxu0 0.0
  %291 = vmatprep.subr.mxu0 0.0
  %292 = vmatpush2.msra.mxu0 0.0
  %293 = vmatprep.subr.mxu0 0.0
  %294 = vmatpush2.msra.mxu0 0.0
  %295 = vmatprep.subr.mxu0 0.0
  %296 = vmatpush2.msra.mxu0 0.0
  %297 = vmatprep.subr.mxu0 0.0
  %298 = vmatpush2.msra.mxu0 0.0
  %299 = vmatprep.mubr.f32.mxu0 0.0
  %300 = vmatmul.mubr.f32.gmra.mxu0 %v212
  %v301 = vpop.f32.mrf.mxu0
  %v302 = vadd.f32 %v208, %v301
  %v303 = vpop.f32.mrf.mxu0
  %304 = vmatprep.mubr.f32.mxu0 0.0
  %305 = vmatmul.mubr.f32.gmra.mxu0 %v215
  %v306 = vpop.f32.mrf.mxu0
  %v307 = vadd.f32 %v208, %v306
  %v308 = vpop.f32.mrf.mxu0
  %309 = vmatprep.mubr.f32.mxu0 0.0
  %310 = vmatmul.mubr.f32.gmra.mxu0 %v218
  %v311 = vpop.f32.mrf.mxu0
  %v312 = vadd.f32 %v208, %v311
  %v313 = vpop.f32.mrf.mxu0
  %314 = vmatprep.mubr.f32.mxu0 0.0
  %315 = vmatmul.mubr.f32.gmra.mxu0 %v221
  %v316 = vpop.f32.mrf.mxu0
  %v317 = vadd.f32 %v208, %v316
  %v318 = vpop.f32.mrf.mxu0
  %319 = vmatprep.mubr.f32.mxu0 0.0
  %320 = vmatmul.mubr.f32.gmra.mxu0 %v224
  %v321 = vpop.f32.mrf.mxu0
  %v322 = vadd.f32 %v208, %v321
  %v323 = vpop.f32.mrf.mxu0
  %324 = vmatprep.mubr.f32.mxu0 0.0
  %325 = vmatmul.mubr.f32.gmra.mxu0 %v227
  %v326 = vpop.f32.mrf.mxu0
  %v327 = vadd.f32 %v208, %v326
  %v328 = vpop.f32.mrf.mxu0
  %329 = vmatprep.mubr.f32.mxu0 0.0
  %330 = vmatmul.mubr.f32.gmra.mxu0 %v230
  %v331 = vpop.f32.mrf.mxu0
  %v332 = vadd.f32 %v208, %v331
  %v333 = vpop.f32.mrf.mxu0
  %334 = vmatprep.mubr.f32.mxu0 0.0
  %335 = vmatmul.mubr.f32.gmra.mxu0 %v233
  %v336 = vpop.f32.mrf.mxu0
  %v337 = vadd.f32 %v208, %v336
  %v338 = vpop.f32.mrf.mxu0
  %339 = vdwg.mxu0
  %v340 = vmul.f32 %v302, 0.01
  %v341 = vmul.f32 %v307, 0.01
  %v342 = vmul.f32 %v312, 0.01
  %v343 = vmul.f32 %v317, 0.01
  %v344 = vmul.f32 %v322, 0.01
  %v345 = vmul.f32 %v327, 0.01
  %v346 = vmul.f32 %v332, 0.01
  %v347 = vmul.f32 %v337, 0.01
  %v348 = vmax.f32 %v302, %v340
  %v349 = vmax.f32 %v307, %v341
  %v350 = vmax.f32 %v312, %v342
  %v351 = vmax.f32 %v317, %v343
  %v352 = vmax.f32 %v322, %v344
  %v353 = vmax.f32 %v327, %v345
  %v354 = vmax.f32 %v332, %v346
  %v355 = vmax.f32 %v337, %v347
  %v356 = vld [vmem:[%s5] sm:$0xff]
  %v357 = vld [vmem:[%s5 + $0x8] sm:$0xff]
  %v358 = vld [vmem:[%s5 + $0x10] sm:$0xff]
  %v359 = vld [vmem:[%s5 + $0x18] sm:$0xff]
  %v360 = vld [vmem:[%s6] sm:$0x1]
  %v362 = vlaneseq
  %v363 = vshrl.u32 %v362, 7
  %v364 = vsub.s32 0, %v363
  %v365 = vrot.slane %v360, %v364
  %v368 = vsel %vm210, %v348, 0
  %v371 = vsel %vm210, %v349, 0
  %v374 = vsel %vm210, %v350, 0
  %v377 = vsel %vm210, %v351, 0
  %v380 = vsel %vm210, %v352, 0
  %v383 = vsel %vm210, %v353, 0
  %v386 = vsel %vm210, %v354, 0
  %v389 = vsel %vm210, %v355, 0
  %391 = vmatprep.subr.mxu0 0.0
  %392 = vmatpush1.msra.mxu0 0.0
  %393 = vmatprep.subr.mxu0 0.0
  %394 = vmatpush1.msra.mxu0 0.0
  %395 = vmatprep.subr.mxu0 0.0
  %396 = vmatpush1.msra.mxu0 0.0
  %397 = vmatprep.subr.mxu0 0.0
  %398 = vmatpush1.msra.mxu0 0.0
  %399 = vmatprep.subr.mxu0 0.0
  %400 = vmatpush1.msra.mxu0 0.0
  %401 = vmatprep.subr.mxu0 0.0
  %402 = vmatpush1.msra.mxu0 0.0
  %403 = vmatprep.subr.mxu0 0.0
  %404 = vmatpush1.msra.mxu0 0.0
  %405 = vmatprep.subr.mxu0 0.0
  %406 = vmatpush1.msra.mxu0 0.0
  %407 = vmatprep.subr.mxu0 0.0
  %408 = vmatpush1.msra.mxu0 0.0
  %409 = vmatprep.subr.mxu0 0.0
  %410 = vmatpush1.msra.mxu0 0.0
  %411 = vmatprep.subr.mxu0 0.0
  %412 = vmatpush1.msra.mxu0 0.0
  %413 = vmatprep.subr.mxu0 0.0
  %414 = vmatpush1.msra.mxu0 0.0
  %415 = vmatprep.subr.mxu0 0.0
  %416 = vmatpush1.msra.mxu0 %v359
  %417 = vmatprep.subr.mxu0 0.0
  %418 = vmatpush1.msra.mxu0 %v358
  %419 = vmatprep.subr.mxu0 0.0
  %420 = vmatpush1.msra.mxu0 %v357
  %421 = vmatprep.subr.mxu0 0.0
  %422 = vmatpush1.msra.mxu0 %v356
  %423 = vmatprep.subr.mxu0 0.0
  %424 = vmatpush2.msra.mxu0 0.0
  %425 = vmatprep.subr.mxu0 0.0
  %426 = vmatpush2.msra.mxu0 0.0
  %427 = vmatprep.subr.mxu0 0.0
  %428 = vmatpush2.msra.mxu0 0.0
  %429 = vmatprep.subr.mxu0 0.0
  %430 = vmatpush2.msra.mxu0 0.0
  %431 = vmatprep.subr.mxu0 0.0
  %432 = vmatpush2.msra.mxu0 0.0
  %433 = vmatprep.subr.mxu0 0.0
  %434 = vmatpush2.msra.mxu0 0.0
  %435 = vmatprep.subr.mxu0 0.0
  %436 = vmatpush2.msra.mxu0 0.0
  %437 = vmatprep.subr.mxu0 0.0
  %438 = vmatpush2.msra.mxu0 0.0
  %439 = vmatprep.subr.mxu0 0.0
  %440 = vmatpush2.msra.mxu0 0.0
  %441 = vmatprep.subr.mxu0 0.0
  %442 = vmatpush2.msra.mxu0 0.0
  %443 = vmatprep.subr.mxu0 0.0
  %444 = vmatpush2.msra.mxu0 0.0
  %445 = vmatprep.subr.mxu0 0.0
  %446 = vmatpush2.msra.mxu0 0.0
  %447 = vmatprep.subr.mxu0 0.0
  %448 = vmatpush2.msra.mxu0 0.0
  %449 = vmatprep.subr.mxu0 0.0
  %450 = vmatpush2.msra.mxu0 0.0
  %451 = vmatprep.subr.mxu0 0.0
  %452 = vmatpush2.msra.mxu0 0.0
  %453 = vmatprep.subr.mxu0 0.0
  %454 = vmatpush2.msra.mxu0 0.0
  %455 = vmatprep.mubr.f32.mxu0 0.0
  %456 = vmatmul.mubr.f32.gmra.mxu0 %v368
  %v457 = vpop.f32.mrf.mxu0
  %v458 = vadd.f32 %v365, %v457
  %v459 = vpop.f32.mrf.mxu0
  %460 = vmatprep.mubr.f32.mxu0 0.0
  %461 = vmatmul.mubr.f32.gmra.mxu0 %v371
  %v462 = vpop.f32.mrf.mxu0
  %v463 = vadd.f32 %v365, %v462
  %v464 = vpop.f32.mrf.mxu0
  %465 = vmatprep.mubr.f32.mxu0 0.0
  %466 = vmatmul.mubr.f32.gmra.mxu0 %v374
  %v467 = vpop.f32.mrf.mxu0
  %v468 = vadd.f32 %v365, %v467
  %v469 = vpop.f32.mrf.mxu0
  %470 = vmatprep.mubr.f32.mxu0 0.0
  %471 = vmatmul.mubr.f32.gmra.mxu0 %v377
  %v472 = vpop.f32.mrf.mxu0
  %v473 = vadd.f32 %v365, %v472
  %v474 = vpop.f32.mrf.mxu0
  %475 = vmatprep.mubr.f32.mxu0 0.0
  %476 = vmatmul.mubr.f32.gmra.mxu0 %v380
  %v477 = vpop.f32.mrf.mxu0
  %v478 = vadd.f32 %v365, %v477
  %v479 = vpop.f32.mrf.mxu0
  %480 = vmatprep.mubr.f32.mxu0 0.0
  %481 = vmatmul.mubr.f32.gmra.mxu0 %v383
  %v482 = vpop.f32.mrf.mxu0
  %v483 = vadd.f32 %v365, %v482
  %v484 = vpop.f32.mrf.mxu0
  %485 = vmatprep.mubr.f32.mxu0 0.0
  %486 = vmatmul.mubr.f32.gmra.mxu0 %v386
  %v487 = vpop.f32.mrf.mxu0
  %v488 = vadd.f32 %v365, %v487
  %v489 = vpop.f32.mrf.mxu0
  %490 = vmatprep.mubr.f32.mxu0 0.0
  %491 = vmatmul.mubr.f32.gmra.mxu0 %v389
  %v492 = vpop.f32.mrf.mxu0
  %v493 = vadd.f32 %v365, %v492
  %v494 = vpop.f32.mrf.mxu0
  %495 = vdwg.mxu0
  %v496 = vld [vmem:[%s7] sm:$0xff]
  %v497 = vld [vmem:[%s7 + $0x8] sm:$0xff]
  %v498 = vld [vmem:[%s7 + $0x10] sm:$0xff]
  %v499 = vld [vmem:[%s7 + $0x18] sm:$0xff]
  %v500 = vld [vmem:[%s7 + $0x20] sm:$0xff]
  %v501 = vld [vmem:[%s7 + $0x28] sm:$0xff]
  %v502 = vld [vmem:[%s7 + $0x30] sm:$0xff]
  %v503 = vld [vmem:[%s7 + $0x38] sm:$0xff]
  %505 = vset.pattern.permute.xlu0 0
  %506 = vperm.xlu0 %505, %v496
  %v507 = vpop.permute.xlu0 %506
  %510 = vset.pattern.permute.xlu0 0
  %511 = vperm.xlu0 %510, %v497
  %v512 = vpop.permute.xlu0 %511
  %515 = vset.pattern.permute.xlu0 0
  %516 = vperm.xlu0 %515, %v498
  %v517 = vpop.permute.xlu0 %516
  %520 = vset.pattern.permute.xlu0 0
  %521 = vperm.xlu0 %520, %v499
  %v522 = vpop.permute.xlu0 %521
  %525 = vset.pattern.permute.xlu0 0
  %526 = vperm.xlu0 %525, %v500
  %v527 = vpop.permute.xlu0 %526
  %530 = vset.pattern.permute.xlu0 0
  %531 = vperm.xlu0 %530, %v501
  %v532 = vpop.permute.xlu0 %531
  %535 = vset.pattern.permute.xlu0 0
  %536 = vperm.xlu0 %535, %v502
  %v537 = vpop.permute.xlu0 %536
  %540 = vset.pattern.permute.xlu0 0
  %541 = vperm.xlu0 %540, %v503
  %v542 = vpop.permute.xlu0 %541
  %v544 = vmul.f32 %v458, %v507
  %v545 = vmul.f32 %v463, %v512
  %v546 = vmul.f32 %v468, %v517
  %v547 = vmul.f32 %v473, %v522
  %v548 = vmul.f32 %v478, %v527
  %v549 = vmul.f32 %v483, %v532
  %v550 = vmul.f32 %v488, %v537
  %v551 = vmul.f32 %v493, %v542
  %vm552 = vcmask 130048
  %553 = vst.msk [vmem:[%s8] sm:$0xff] %vm552, %v544
  %554 = vst.msk [vmem:[%s8 + $0x8] sm:$0xff] %vm552, %v545
  %555 = vst.msk [vmem:[%s8 + $0x10] sm:$0xff] %vm552, %v546
  %556 = vst.msk [vmem:[%s8 + $0x18] sm:$0xff] %vm552, %v547
  %557 = vst.msk [vmem:[%s8 + $0x20] sm:$0xff] %vm552, %v548
  %558 = vst.msk [vmem:[%s8 + $0x28] sm:$0xff] %vm552, %v549
  %559 = vst.msk [vmem:[%s8 + $0x30] sm:$0xff] %vm552, %v550
  %560 = vst.msk [vmem:[%s8 + $0x38] sm:$0xff] %vm552, %v551
  // Predicated region
  $region34: #{tpu_custom_call.1} parent=0 // pred_check
    _
  $region35: #{tpu_custom_call.1} parent=0 // pred_check_branch
    %562 = sbr.rel (0) target = $region37
  $region36: #{tpu_custom_call.1} parent=0 // pred_region
    _
  $region37: #{tpu_custom_call.1} parent=0 // pred_fallthru
    _
  // Predicated region
  $region38: #{tpu_custom_call.1} parent=0 // pred_check
    _
  $region39: #{tpu_custom_call.1} parent=0 // pred_check_branch
    %564 = sbr.rel (0) target = $region41
  $region40: #{tpu_custom_call.1} parent=0 // pred_region
    _
  $region41: #{tpu_custom_call.1} parent=0 // pred_fallthru
    _

</llo_original>
